<compile_context>
chip_gen: v6e
topology: v6e:2x2x1
jax: 0.10.0
libtpu: 0.0.40
codegen_flags: <defaults>
</compile_context>

<pallas_src>
import functools

import jax
import jax.numpy as jnp
from jax.experimental import pallas as pl
from jax.experimental.pallas import tpu as pltpu


# ---------------------------------------------------------------------------
# Kernels
# ---------------------------------------------------------------------------

def _contrib(pred_ref, gt_ref, conf_ref, alpha):
    """Per-pixel conf-weighted contribution for the current row tile."""
    p = pred_ref[...].astype(jnp.float32)          # (1, C, TR, 128)
    g = gt_ref[...].astype(jnp.float32)            # (1, C, TR, 128)
    c = conf_ref[...].astype(jnp.float32)          # (1, TR, 128)
    # Per-pixel L1: C sits on a leading (vreg-index) axis -> plain VPU adds,
    # no cross-sublane XLU reduce, no sublane padding.
    pix = jnp.sum(jnp.abs(p - g), axis=1)          # (1, TR, 128)
    # log() goes to the EUP (separate bundle slot) -- effectively free here.
    return pix * c - alpha * jnp.log(c)            # (1, TR, 128)


def _kernel_accumulate(pred_ref, gt_ref, conf_ref, out_ref, *, alpha):
    """grid = (B, n_j); j is the accumulation axis (resident output block)."""
    @pl.when(pl.program_id(1) == 0)
    def _():
        out_ref[...] = jnp.zeros_like(out_ref)

    out_ref[...] += _contrib(pred_ref, gt_ref, conf_ref, alpha)


def _kernel_partials(pred_ref, gt_ref, conf_ref, out_ref, *, alpha):
    """grid = (B, n_j); fully parallel, one partial tile written per step."""
    out_ref[...] = _contrib(pred_ref, gt_ref, conf_ref, alpha)[:, None, :, :]


# ---------------------------------------------------------------------------
# Hardware-aware sizing helpers
# ---------------------------------------------------------------------------

def _vmem_capacity_bytes():
    try:
        return int(pltpu.get_tpu_info().vmem_capacity_bytes)
    except Exception:
        return 64 * 1024 * 1024            # conservative: v7x per-TC VMEM


def _tensorcores_per_chip():
    try:
        kind = jax.devices()[0].device_kind.lower()
    except Exception:
        return 1
    return 2 if "v7" in kind else 1        # v5e/v6e: 1 TC; v7x: 2 TC megacore


def _choose_row_tile(r, c, in_itemsize, conf_itemsize, budget_bytes, align):
    """Rows (of 128 lanes) per block.  Padding-aware, dtype-aware VMEM model."""
    # Bytes per 128-lane row held in VMEM across the double-buffered pipeline:
    # pred + gt (input dtype), conf (its dtype), and the f32 output rows.
    row_bytes = 2 * 128 * (2 * c * in_itemsize + conf_itemsize + 4)
    tr_vmem = budget_bytes // max(1, row_bytes)
    # Keep each pred/gt block around ~2 MiB: HBM roofline already saturates
    # well below that, and smaller blocks leave VMEM headroom on v7x.
    tr_block = (2 * 1024 * 1024) // max(1, c * 128 * in_itemsize)
    # Give each batch at least ~4 pipeline steps when there is room for it.
    tr_steps = max(pl.cdiv(r, 4), align)
    # Never exceed one whole (alignment-padded) row set.
    tr_full = pl.cdiv(r, align) * align

    tr = min(tr_vmem, tr_block, tr_steps, tr_full)
    tr = max(align, (tr // align) * align)
    return int(tr)


# ---------------------------------------------------------------------------
# Wrapper
# ---------------------------------------------------------------------------

def conf_loss(pred_nchw, gt_nchw, conf_nhw, *, alpha=0.2, _force_partials=None):
    """pred/gt: (B, C, H, W) float (f32 or bf16); conf: (B, H, W) float, > 0."""
    B, C, H, W = pred_nchw.shape
    HW = H * W
    N = B * HW
    if N == 0:
        # matches `conf_loss.mean() if conf_loss.numel() > 0 else 0`
        return jnp.float32(0.0)

    in_itemsize = jnp.dtype(pred_nchw.dtype).itemsize
    conf_itemsize = jnp.dtype(conf_nhw.dtype).itemsize
    # Sublane packing: f32 -> 8 rows, bf16 -> 16, int8/fp8 -> 32.
    align = max(8, 32 // in_itemsize)

    # Generation-aware VMEM budgets (v5e/v6e: 128 MiB phys, v7x: 64 MiB/TC).
    capacity = _vmem_capacity_bytes()
    vmem_limit = (3 * capacity) // 4
    block_budget = capacity // 2

    r = pl.cdiv(HW, 128)
    tr = _choose_row_tile(r, C, in_itemsize, conf_itemsize, block_budget, align)
    n_j = pl.cdiv(r, tr)
    hw_pad = n_j * tr * 128

    # Pure reshapes of contiguous NCHW (no transpose).
    pred = pred_nchw.reshape(B, C, HW)
    gt = gt_nchw.reshape(B, C, HW)
    conf = conf_nhw.reshape(B, HW)

    if hw_pad != HW:
        # Ragged tail: pad with pred == gt == 0 and conf == 1.0 so the padded
        # pixels contribute exactly 0 (0 * 1 - alpha * log(1) == 0).
        pw = hw_pad - HW
        pred = jnp.pad(pred, ((0, 0), (0, 0), (0, pw)))
        gt = jnp.pad(gt, ((0, 0), (0, 0), (0, pw)))
        conf = jnp.pad(conf, ((0, 0), (0, pw)), constant_values=1.0)

    pred = pred.reshape(B, C, n_j * tr, 128)
    gt = gt.reshape(B, C, n_j * tr, 128)
    conf = conf.reshape(B, n_j * tr, 128)

    # v7x: if the batch axis alone cannot keep both TensorCores busy, emit
    # per-j partials so BOTH grid axes are parallel.  The extra writeback is
    # only hw_pad*4 bytes/batch vs (2C+1)*hw_pad*itemsize of reads.
    if _force_partials is None:
        use_partials = (_tensorcores_per_chip() > 1) and (B % 2 != 0)
    else:
        use_partials = bool(_force_partials)

    in_specs = [
        pl.BlockSpec((1, C, tr, 128), lambda b, j: (b, 0, j, 0)),
        pl.BlockSpec((1, C, tr, 128), lambda b, j: (b, 0, j, 0)),
        pl.BlockSpec((1, tr, 128), lambda b, j: (b, j, 0)),
    ]

    if use_partials:
        kernel = functools.partial(_kernel_partials, alpha=float(alpha))
        out_shape = jax.ShapeDtypeStruct((B, n_j, tr, 128), jnp.float32)
        out_specs = pl.BlockSpec((1, 1, tr, 128), lambda b, j: (b, j, 0, 0))
        dim_sem = ("parallel", "parallel")
        out_bytes = B * hw_pad * 4
    else:
        kernel = functools.partial(_kernel_accumulate, alpha=float(alpha))
        out_shape = jax.ShapeDtypeStruct((B, tr, 128), jnp.float32)
        out_specs = pl.BlockSpec((1, tr, 128), lambda b, j: (b, 0, 0))
        dim_sem = ("parallel", "arbitrary")
        out_bytes = B * tr * 128 * 4

    cost = pl.CostEstimate(
        flops=int(N * (3 * C + 3)),
        transcendentals=int(N),                                  # log(conf)
        bytes_accessed=int(B * hw_pad * (2 * C * in_itemsize + conf_itemsize)
                           + out_bytes),
    )

    partials = pl.pallas_call(
        kernel,
        out_shape=out_shape,
        grid_spec=pltpu.PrefetchScalarGridSpec(
            num_scalar_prefetch=0,
            grid=(B, n_j),
            in_specs=in_specs,
            out_specs=out_specs,
        ),
        compiler_params=pltpu.CompilerParams(
            dimension_semantics=dim_sem,
            vmem_limit_bytes=int(vmem_limit),
        ),
        cost_estimate=cost,
    )(pred, gt, conf)

    # Final reduction + mean over the small f32 partials (padding contributes 0).
    return jnp.sum(partials) * (1.0 / N)


# ---------------------------------------------------------------------------
# Reference + self-test
# ---------------------------------------------------------------------------

def _reference(pred_nchw, gt_nchw, conf_nhw, alpha=0.2):
    loss = jnp.sum(jnp.abs(pred_nchw - gt_nchw), axis=1)         # (B, H, W)
    cl = loss * conf_nhw - alpha * jnp.log(conf_nhw)
    return jnp.mean(cl)


if __name__ == "__main__":
    key = jax.random.PRNGKey(0)

    # --- main check: small aligned shape, accumulator path ------------------
    k1, k2, k3, k4, k5, k6 = jax.random.split(key, 6)
    B, C, H, W = 2, 4, 16, 16
    pred = jax.random.normal(k1, (B, C, H, W), dtype=jnp.float32)
    gt = jax.random.normal(k2, (B, C, H, W), dtype=jnp.float32)
    # confidence must be strictly positive (log(conf) is taken)
    conf = jax.nn.softplus(jax.random.normal(k3, (B, H, W), dtype=jnp.float32)) + 0.1

    out = jax.block_until_ready(conf_loss(pred, gt, conf, alpha=0.2))
    ref = _reference(pred, gt, conf, alpha=0.2)
    assert jnp.allclose(out, ref, rtol=1e-5, atol=1e-5), (out, ref)

    # --- per-j partials (both-parallel, v7x-style) path on the same data ----
    out_p = jax.block_until_ready(
        conf_loss(pred, gt, conf, alpha=0.2, _force_partials=True))
    assert jnp.allclose(out_p, ref, rtol=1e-5, atol=1e-5), (out_p, ref)

    # --- ragged HW (no 128-multiple divisor) exercises the padding path -----
    B2, C2, H2, W2 = 2, 3, 10, 10
    pred2 = jax.random.normal(k4, (B2, C2, H2, W2), dtype=jnp.float32)
    gt2 = jax.random.normal(k5, (B2, C2, H2, W2), dtype=jnp.float32)
    conf2 = jax.nn.softplus(jax.random.normal(k6, (B2, H2, W2), dtype=jnp.float32)) + 0.1

    out2 = jax.block_until_ready(conf_loss(pred2, gt2, conf2, alpha=0.2))
    ref2 = _reference(pred2, gt2, conf2, alpha=0.2)
    assert jnp.allclose(out2, ref2, rtol=1e-5, atol=1e-5), (out2, ref2)

    print("KERNEL_OK")
</pallas_src>

<mosaic_0001>
module attributes {stable_mosaic.version = 11 : i64} {
  func.func @_kernel_accumulate(%arg0: i32, %arg1: i32, %arg2: memref<1x4x8x128xf32, #tpu.memory_space<vmem>>, %arg3: memref<1x4x8x128xf32, #tpu.memory_space<vmem>>, %arg4: memref<1x8x128xf32, #tpu.memory_space<vmem>>, %arg5: memref<1x8x128xf32, #tpu.memory_space<vmem>>) attributes {dimension_semantics = [#tpu.dimension_semantics<parallel>, #tpu.dimension_semantics<arbitrary>], iteration_bounds = array<i64: 2, 1>, scalar_prefetch = 0 : i64, scratch_operands = 0 : i64, tpu.core_type = #tpu.core_type<tc>, window_params = [{transform_indices = @transform_0, window_bounds = array<i64: 1, 4, 8, 128>}, {transform_indices = @transform_1, window_bounds = array<i64: 1, 4, 8, 128>}, {transform_indices = @transform_2, window_bounds = array<i64: 1, 8, 128>}, {transform_indices = @transform_3, window_bounds = array<i64: 1, 8, 128>}]} {
    %c0_i32 = arith.constant 0 : i32
    %0 = arith.cmpi eq, %arg1, %c0_i32 : i32
    %1 = arith.extui %0 : i1 to i32
    %c0_i32_0 = arith.constant 0 : i32
    %2 = arith.cmpi ne, %1, %c0_i32_0 : i32
    scf.if %2 {
      %cst_18 = arith.constant 0.000000e+00 : f32
      %17 = vector.broadcast %cst_18 : f32 to vector<1x8x128xf32>
      %c0_19 = arith.constant 0 : index
      %c0_20 = arith.constant 0 : index
      %c0_21 = arith.constant 0 : index
      %18 = vector.load %arg5[%c0_19, %c0_20, %c0_21] : memref<1x8x128xf32, #tpu.memory_space<vmem>>, vector<1x8x128xf32>
      tpu.vector_store %arg5[%c0_19, %c0_20, %c0_21], %17 {strides = array<i32>} : memref<1x8x128xf32, #tpu.memory_space<vmem>>, vector<1x8x128xf32>,
    } else {
    }
    %c0 = arith.constant 0 : index
    %c0_1 = arith.constant 0 : index
    %c0_2 = arith.constant 0 : index
    %3 = vector.load %arg5[%c0, %c0_1, %c0_2] : memref<1x8x128xf32, #tpu.memory_space<vmem>>, vector<1x8x128xf32>
    %c0_3 = arith.constant 0 : index
    %c0_4 = arith.constant 0 : index
    %c0_5 = arith.constant 0 : index
    %c0_6 = arith.constant 0 : index
    %4 = vector.load %arg2[%c0_3, %c0_4, %c0_5, %c0_6] : memref<1x4x8x128xf32, #tpu.memory_space<vmem>>, vector<1x4x8x128xf32>
    %c0_7 = arith.constant 0 : index
    %c0_8 = arith.constant 0 : index
    %c0_9 = arith.constant 0 : index
    %c0_10 = arith.constant 0 : index
    %5 = vector.load %arg3[%c0_7, %c0_8, %c0_9, %c0_10] : memref<1x4x8x128xf32, #tpu.memory_space<vmem>>, vector<1x4x8x128xf32>
    %c0_11 = arith.constant 0 : index
    %c0_12 = arith.constant 0 : index
    %c0_13 = arith.constant 0 : index
    %6 = vector.load %arg4[%c0_11, %c0_12, %c0_13] : memref<1x8x128xf32, #tpu.memory_space<vmem>>, vector<1x8x128xf32>
    %7 = arith.subf %4, %5 : vector<1x4x8x128xf32>
    %8 = math.absf %7 : vector<1x4x8x128xf32>
    %cst = arith.constant dense<0.000000e+00> : vector<1x8x128xf32>
    %9 = vector.multi_reduction <add>, %8, %cst [1] : vector<1x4x8x128xf32> to vector<1x8x128xf32>
    %10 = arith.mulf %9, %6 : vector<1x8x128xf32>
    %11 = math.log %6 : vector<1x8x128xf32>
    %cst_14 = arith.constant 2.000000e-01 : f32
    %12 = vector.broadcast %cst_14 : f32 to vector<1x8x128xf32>
    %13 = arith.mulf %12, %11 : vector<1x8x128xf32>
    %14 = arith.subf %10, %13 : vector<1x8x128xf32>
    %15 = arith.addf %3, %14 : vector<1x8x128xf32>
    %c0_15 = arith.constant 0 : index
    %c0_16 = arith.constant 0 : index
    %c0_17 = arith.constant 0 : index
    %16 = vector.load %arg5[%c0_15, %c0_16, %c0_17] : memref<1x8x128xf32, #tpu.memory_space<vmem>>, vector<1x8x128xf32>
    tpu.vector_store %arg5[%c0_15, %c0_16, %c0_17], %15 {strides = array<i32>} : memref<1x8x128xf32, #tpu.memory_space<vmem>>, vector<1x8x128xf32>,
    return
  }
  func.func @transform_0(%arg0: i32, %arg1: i32) -> (i32, i32, i32, i32) {
    %c0_i32 = arith.constant 0 : i32
    %c0_i32_0 = arith.constant 0 : i32
    %c0_i32_1 = arith.constant 0 : i32
    return %arg0, %c0_i32, %arg1, %c0_i32_0 : i32, i32, i32, i32
  }
  func.func @transform_1(%arg0: i32, %arg1: i32) -> (i32, i32, i32, i32) {
    %c0_i32 = arith.constant 0 : i32
    %c0_i32_0 = arith.constant 0 : i32
    %c0_i32_1 = arith.constant 0 : i32
    return %arg0, %c0_i32, %arg1, %c0_i32_0 : i32, i32, i32, i32
  }
  func.func @transform_2(%arg0: i32, %arg1: i32) -> (i32, i32, i32) {
    %c0_i32 = arith.constant 0 : i32
    %c0_i32_0 = arith.constant 0 : i32
    return %arg0, %arg1, %c0_i32 : i32, i32, i32
  }
  func.func @transform_3(%arg0: i32, %arg1: i32) -> (i32, i32, i32) {
    %c0_i32 = arith.constant 0 : i32
    %c0_i32_0 = arith.constant 0 : i32
    %c0_i32_1 = arith.constant 0 : i32
    return %arg0, %c0_i32, %c0_i32_0 : i32, i32, i32
  }
}

</mosaic_0001>

<llo_original>
// kernel: tpu_custom_call.1
$region0: #{tpu_custom_call.1}
  #allocation0 [shape = 'u32[]', space=smem, size = 0x4, offset = 0x4, fixed_abs, tag = 'smem constant byte address 0x4 - core index']
  #allocation1 [shape = 'u32[144,128]{1,0:T(1,128)}', space=vmem, size = 0x12000, scoped, tag = 'internal scratch']
  %s0 = inlined_call_operand.hbm [shape: f32[2,4,8,128], index: 0, kind: input, shape index: {}]
  %s1 = inlined_call_operand.hbm [shape: f32[2,4,8,128], index: 1, kind: input, shape index: {}]
  %s2 = inlined_call_operand.hbm [shape: f32[2,8,128], index: 2, kind: input, shape index: {}]
  %s3 = inlined_call_operand.hbm [shape: f32[2,8,128], index: 3, kind: output, shape index: {}]
  %s4 = sld [smem:[#allocation0]]
  $region61: #{tpu_custom_call.1} parent=0
    _
  %s6 = ssub.s32 1, %s4
  %s7 = scalar_select 0, %s6, %s4
  $region1: #{tpu_custom_call.1} parent=0
    #allocation2 [shape = 'u8[32768]{0}', space=vmem, size = 0x8000, scoped, tag = 'input window, operand 0']
    #allocation3 [shape = 's32[2]{0}', space=sflag, size = 0x8, scoped, tag = 'scoped memory for tpu_custom_call.1']
    #allocation4 [shape = 's32[2]{0}', space=sflag, size = 0x8, scoped, tag = 'scoped memory for tpu_custom_call.1']
    #allocation5 [shape = 'u8[32768]{0}', space=vmem, size = 0x8000, scoped, tag = 'input window, operand 1']
    #allocation6 [shape = 's32[2]{0}', space=sflag, size = 0x8, scoped, tag = 'scoped memory for tpu_custom_call.1']
    #allocation7 [shape = 'u8[8192]{0}', space=vmem, size = 0x2000, scoped, tag = 'input window, operand 2']
    #allocation8 [shape = 'u8[8192]{0}', space=vmem, size = 0x2000, scoped, tag = 'output window, operand 0']
    %8 = vsyncpa [#allocation3], 0
    %s9 = scalar_lea.sflag [#allocation3], 1
    %10 = vsyncpa %s9, 0
    %11 = vsyncpa [#allocation6], 0
    %s12 = scalar_lea.sflag [#allocation6], 1
    %13 = vsyncpa %s12, 0
    %14 = vsyncpa [#allocation4], 0
    %s15 = scalar_lea.sflag [#allocation4], 1
    %16 = vsyncpa %s15, 0
    loop: start=0, step=1, limit=4
    $region2: #{tpu_custom_call.1} parent=1 // loop_pre_header
      _
    $region3: #{tpu_custom_call.1} parent=1 // loop_header
      %s18 = sphi 0, %s22
      %p19 = scmp.ge.s32.totalorder %s18, 4
      %s25 = sphi 0, %s37
      %s26 = sphi 0, %s33
      %s27 = sphi 0, %s25
      %s28 = sphi 0, %s26
      %s29 = sphi 0, %s27
      %s30 = sphi 0, %s28
      %s42 = sphi 0, %s44
      %s45 = sphi 0, %s42
      %s46 = sphi 0, %s45
      %s62 = sphi 0, %s46
      %s70 = sphi 0, %s72
      %s73 = sphi 0, %s70
      %s74 = sphi 0, %s73
      %s90 = sphi 0, %s74
      %s98 = sphi 0, %s100
      %s101 = sphi 0, %s98
      %s102 = sphi 0, %s101
      %s118 = sphi 0, %s102
      %s124 = sphi 0, %s126
      %s127 = sphi 0, %s124
      %s128 = sphi 0, %s127
      %s144 = sphi 0, %s128
    $region4: #{tpu_custom_call.1} parent=1 // loop_header_branch
      %21 = sbr.rel (%p19) target = $region8
    $region5: #{tpu_custom_call.1} parent=1 // loop_body
      %s23 = ssub.s32 %s18, 1
      %s24 = ssub.s32 %s18, 2
      %s31 = sadd.s32 1, %s26
      %p32 = scmp.ge.s32.totalorder %s31, 1
      %s33 = scalar_select %p32, 0, %s31
      %s34 = sadd.s32 1, %s25
      %s35 = scalar_select %p32, %s34, %s25
      %p36 = scmp.ge.s32.totalorder %s35, 2
      %s37 = scalar_select %p36, 0, %s35
      %s38 = ssub.s32 %s25, %s37
      %s39 = ssub.s32 %s26, %s33
      %s40 = sor.u32 %s38, %s39
      %p41 = scmp.eq.s32.totalorder %s40, 0
      %s43 = sadd.s32 %s42, 1
      %s44 = scalar_select %p41, %s42, %s43
      %p47 = pneg %p41
      %p48 = scmp.eq.s32.totalorder %s18, 1
      %p49 = por %p47, %p48
      %p50 = scmp.ne.s32.totalorder %s42, %s45
      %p51 = scmp.eq.s32.totalorder %s18, 0
      %p52 = por %p50, %p51
      %p53 = scmp.ne.s32.totalorder %s42, %s45
      %p54 = scmp.eq.s32.totalorder %s23, 1
      %p55 = por %p53, %p54
      %p56 = scmp.ne.s32.totalorder %s45, %s46
      %p57 = scmp.eq.s32.totalorder %s23, 0
      %p58 = por %p56, %p57
      %p59 = scmp.ne.s32.totalorder %s45, %s46
      %p60 = scmp.eq.s32.totalorder %s24, 1
      %p61 = por %p59, %p60
      %p63 = scmp.ne.s32.totalorder %s46, %s62
      %p64 = scmp.eq.s32.totalorder %s24, 0
      %p65 = por %p63, %p64
      %s66 = ssub.s32 %s25, %s37
      %s67 = ssub.s32 %s26, %s33
      %s68 = sor.u32 %s66, %s67
      %p69 = scmp.eq.s32.totalorder %s68, 0
      %s71 = sadd.s32 %s70, 1
      %s72 = scalar_select %p69, %s70, %s71
      %p75 = pneg %p69
      %p76 = scmp.eq.s32.totalorder %s18, 1
      %p77 = por %p75, %p76
      %p78 = scmp.ne.s32.totalorder %s70, %s73
      %p79 = scmp.eq.s32.totalorder %s18, 0
      %p80 = por %p78, %p79
      %p81 = scmp.ne.s32.totalorder %s70, %s73
      %p82 = scmp.eq.s32.totalorder %s23, 1
      %p83 = por %p81, %p82
      %p84 = scmp.ne.s32.totalorder %s73, %s74
      %p85 = scmp.eq.s32.totalorder %s23, 0
      %p86 = por %p84, %p85
      %p87 = scmp.ne.s32.totalorder %s73, %s74
      %p88 = scmp.eq.s32.totalorder %s24, 1
      %p89 = por %p87, %p88
      %p91 = scmp.ne.s32.totalorder %s74, %s90
      %p92 = scmp.eq.s32.totalorder %s24, 0
      %p93 = por %p91, %p92
      %s94 = ssub.s32 %s25, %s37
      %s95 = ssub.s32 %s26, %s33
      %s96 = sor.u32 %s94, %s95
      %p97 = scmp.eq.s32.totalorder %s96, 0
      %s99 = sadd.s32 %s98, 1
      %s100 = scalar_select %p97, %s98, %s99
      %p103 = pneg %p97
      %p104 = scmp.eq.s32.totalorder %s18, 1
      %p105 = por %p103, %p104
      %p106 = scmp.ne.s32.totalorder %s98, %s101
      %p107 = scmp.eq.s32.totalorder %s18, 0
      %p108 = por %p106, %p107
      %p109 = scmp.ne.s32.totalorder %s98, %s101
      %p110 = scmp.eq.s32.totalorder %s23, 1
      %p111 = por %p109, %p110
      %p112 = scmp.ne.s32.totalorder %s101, %s102
      %p113 = scmp.eq.s32.totalorder %s23, 0
      %p114 = por %p112, %p113
      %p115 = scmp.ne.s32.totalorder %s101, %s102
      %p116 = scmp.eq.s32.totalorder %s24, 1
      %p117 = por %p115, %p116
      %p119 = scmp.ne.s32.totalorder %s102, %s118
      %p120 = scmp.eq.s32.totalorder %s24, 0
      %p121 = por %p119, %p120
      %s122 = ssub.s32 %s25, %s37
      %p123 = scmp.eq.s32.totalorder %s122, 0
      %s125 = sadd.s32 %s124, 1
      %s126 = scalar_select %p123, %s124, %s125
      %p129 = pneg %p123
      %p130 = scmp.eq.s32.totalorder %s18, 1
      %p131 = por %p129, %p130
      %p132 = scmp.ne.s32.totalorder %s124, %s127
      %p133 = scmp.eq.s32.totalorder %s18, 0
      %p134 = por %p132, %p133
      %p135 = scmp.ne.s32.totalorder %s124, %s127
      %p136 = scmp.eq.s32.totalorder %s23, 1
      %p137 = por %p135, %p136
      %p138 = scmp.ne.s32.totalorder %s127, %s128
      %p139 = scmp.eq.s32.totalorder %s23, 0
      %p140 = por %p138, %p139
      %p141 = scmp.ne.s32.totalorder %s127, %s128
      %p142 = scmp.eq.s32.totalorder %s24, 1
      %p143 = por %p141, %p142
      %p145 = scmp.ne.s32.totalorder %s128, %s144
      %p146 = scmp.eq.s32.totalorder %s24, 0
      %p147 = por %p145, %p146
      %p148 = scmp.le.s32.totalorder 1, %s18
      %p149 = scmp.lt.s32.totalorder %s18, 3
      %p150 = pnand %p148, %p149
      %p151 = pneg %p150
      // Predicated region
      $region9: #{tpu_custom_call.1} parent=5 // pred_check
        _
      $region10: #{tpu_custom_call.1} parent=5 // pred_check_branch
        %153 = sbr.rel (%p150) target = $region12
      $region11: #{tpu_custom_call.1} parent=5 // pred_region
        %s154 = ssub.s32 %s18, 1
      $region12: #{tpu_custom_call.1} parent=5 // pred_fallthru
        _
      %p155 = scmp.lt.s32.totalorder %s18, 2
      // Predicated region
      $region13: #{tpu_custom_call.1} parent=5 // pred_check
        %p156 = pneg %p155
      $region14: #{tpu_custom_call.1} parent=5 // pred_check_branch
        %158 = sbr.rel (%p156) target = $region16
      $region15: #{tpu_custom_call.1} parent=5 // pred_region
        // Predicated region
        $region17: #{tpu_custom_call.1} parent=15 // pred_check
          %p159 = pneg %p52
        $region18: #{tpu_custom_call.1} parent=15 // pred_check_branch
          %161 = sbr.rel (%p159) target = $region20
        $region19: #{tpu_custom_call.1} parent=15 // pred_region
          %s162 = sand.u32 %s42, 1
          %s163 = scalar_lea.sflag [#allocation3], %s162
          %s164 = sand.u32 %s42, 1
          %s165 = smul.addr %s164, 32
          %s166 = scalar_lea.vmem [#allocation2], %s165
          %s168 = ssub.s32 512, 512
          %169 = vsyncadd %s163, %s168
          %s170 = smul.addr %s25, 4
          %s171 = sadd.s32 %s26, %s170
          %s172 = smul.addr %s171, 128
          %s173 = scalar_lea.hbm %s0, %s172
          %s174 = sshll.u32 %s166, 4
          %s175 = int_to_ptr.vmem [resolvable:$true] %s174
          %180 = dma.hbm_to_vmem [thread:$0]  %s173, 512, %s175, %s163, 128, 128, 8
        $region20: #{tpu_custom_call.1} parent=15 // pred_fallthru
          _
        // Predicated region
        $region21: #{tpu_custom_call.1} parent=15 // pred_check
          %p181 = pneg %p80
        $region22: #{tpu_custom_call.1} parent=15 // pred_check_branch
          %183 = sbr.rel (%p181) target = $region24
        $region23: #{tpu_custom_call.1} parent=15 // pred_region
          %s184 = sand.u32 %s18, 1
          %s185 = scalar_lea.sflag [#allocation6], %s184
          %s186 = sand.u32 %s70, 1
          %s187 = smul.addr %s186, 32
          %s188 = scalar_lea.vmem [#allocation5], %s187
          %s190 = ssub.s32 512, 512
          %191 = vsyncadd %s185, %s190
          %s192 = smul.addr %s25, 4
          %s193 = sadd.s32 %s26, %s192
          %s194 = smul.addr %s193, 128
          %s195 = scalar_lea.hbm %s1, %s194
          %s196 = sshll.u32 %s188, 4
          %s197 = int_to_ptr.vmem [resolvable:$true] %s196
          %202 = dma.hbm_to_vmem [thread:$0]  %s195, 512, %s197, %s185, 128, 128, 8
        $region24: #{tpu_custom_call.1} parent=15 // pred_fallthru
          _
        // Predicated region
        $region25: #{tpu_custom_call.1} parent=15 // pred_check
          %p203 = pneg %p108
        $region26: #{tpu_custom_call.1} parent=15 // pred_check_branch
          %205 = sbr.rel (%p203) target = $region28
        $region27: #{tpu_custom_call.1} parent=15 // pred_region
          %s206 = sand.u32 %s18, 1
          %s207 = scalar_lea.sflag [#allocation6], %s206
          %s208 = sand.u32 %s98, 1
          %s209 = smul.addr %s208, 8
          %s210 = scalar_lea.vmem [#allocation7], %s209
          %s212 = ssub.s32 128, 128
          %213 = vsyncadd %s207, %s212
          %s214 = sadd.s32 %s26, %s25
          %s215 = smul.addr %s214, 128
          %s216 = scalar_lea.hbm %s2, %s215
          %s218 = sshll.u32 %s210, 4
          %s219 = int_to_ptr.vmem [resolvable:$true] %s218
          %221 = dma.hbm_to_vmem [thread:$0]  %s216, 128, %s219, %s207
        $region28: #{tpu_custom_call.1} parent=15 // pred_fallthru
          _
      $region16: #{tpu_custom_call.1} parent=5 // pred_fallthru
        _
      %p222 = scmp.le.s32.totalorder 1, %s18
      %p223 = scmp.lt.s32.totalorder %s18, 3
      %p224 = pnand %p222, %p223
      %p225 = pneg %p224
      // Predicated region
      $region29: #{tpu_custom_call.1} parent=5 // pred_check
        _
      $region30: #{tpu_custom_call.1} parent=5 // pred_check_branch
        %227 = sbr.rel (%p224) target = $region32
      $region31: #{tpu_custom_call.1} parent=5 // pred_region
        %s228 = ssub.s32 %s18, 1
        %s229 = sand.u32 %s45, 1
        %s230 = scalar_lea.sflag [#allocation3], %s229
        %s231 = sand.u32 %s45, 1
        %s232 = smul.addr %s231, 32
        %s233 = scalar_lea.vmem [#allocation2], %s232
        // Predicated region
        $region33: #{tpu_custom_call.1} parent=31 // pred_check
          %p234 = pneg %p58
        $region34: #{tpu_custom_call.1} parent=31 // pred_check_branch
          %236 = sbr.rel (%p234) target = $region36
        $region35: #{tpu_custom_call.1} parent=31 // pred_region
          %237 = dma.done %s230, 512
        $region36: #{tpu_custom_call.1} parent=31 // pred_fallthru
          _
        %s238 = sand.u32 %s23, 1
        %s239 = scalar_lea.sflag [#allocation6], %s238
        %s240 = sand.u32 %s73, 1
        %s241 = smul.addr %s240, 32
        %s242 = scalar_lea.vmem [#allocation5], %s241
        // Predicated region
        $region37: #{tpu_custom_call.1} parent=31 // pred_check
          %p243 = pneg %p86
        $region38: #{tpu_custom_call.1} parent=31 // pred_check_branch
          %245 = sbr.rel (%p243) target = $region40
        $region39: #{tpu_custom_call.1} parent=31 // pred_region
          %246 = dma.done %s239, 512
        $region40: #{tpu_custom_call.1} parent=31 // pred_fallthru
          _
        %s247 = sand.u32 %s23, 1
        %s248 = scalar_lea.sflag [#allocation6], %s247
        %s249 = sand.u32 %s101, 1
        %s250 = smul.addr %s249, 8
        %s251 = scalar_lea.vmem [#allocation7], %s250
        // Predicated region
        $region41: #{tpu_custom_call.1} parent=31 // pred_check
          %p252 = pneg %p114
        $region42: #{tpu_custom_call.1} parent=31 // pred_check_branch
          %254 = sbr.rel (%p252) target = $region44
        $region43: #{tpu_custom_call.1} parent=31 // pred_region
          %255 = dma.done %s248, 128
        $region44: #{tpu_custom_call.1} parent=31 // pred_fallthru
          _
        %s256 = sand.u32 %s45, 1
        %s257 = scalar_lea.sflag [#allocation3], %s256
        %s258 = sand.u32 %s45, 1
        %s259 = smul.addr %s258, 32
        %s260 = scalar_lea.vmem [#allocation2], %s259
        %p261 = pneg %p58
        %p262 = pneg %p55
        %s263 = sand.u32 %s23, 1
        %s264 = scalar_lea.sflag [#allocation6], %s263
        %s265 = sand.u32 %s73, 1
        %s266 = smul.addr %s265, 32
        %s267 = scalar_lea.vmem [#allocation5], %s266
        %p268 = pneg %p86
        %p269 = pneg %p83
        %s270 = sand.u32 %s23, 1
        %s271 = scalar_lea.sflag [#allocation6], %s270
        %s272 = sand.u32 %s101, 1
        %s273 = smul.addr %s272, 8
        %s274 = scalar_lea.vmem [#allocation7], %s273
        %p275 = pneg %p114
        %p276 = pneg %p111
        %p277 = pneg %p140
        %p278 = pneg %p137
        %s279 = sand.u32 %s127, 1
        %s280 = scalar_lea.sflag [#allocation4], %s279
        %s281 = sand.u32 %s127, 1
        %s282 = smul.addr %s281, 8
        %s283 = scalar_lea.vmem [#allocation8], %s282
        %p284 = scmp.eq.s32.totalorder %s28, 0
        // Predicated region
        $region45: #{tpu_custom_call.1} parent=31 // pred_check
          %p285 = pneg %p284
        $region46: #{tpu_custom_call.1} parent=31 // pred_check_branch
          %287 = sbr.rel (%p285) target = $region48
        $region47: #{tpu_custom_call.1} parent=31 // pred_region
          %288 = vst [vmem:[%s283] sm:$0xff] 0.0
        $region48: #{tpu_custom_call.1} parent=31 // pred_fallthru
          _
        %v289 = vld [vmem:[%s283] sm:$0xff]
        %v290 = vld [vmem:[%s233] sm:$0xff]
        %v291 = vld [vmem:[%s233 + $0x8] sm:$0xff]
        %v292 = vld [vmem:[%s233 + $0x10] sm:$0xff]
        %v293 = vld [vmem:[%s233 + $0x18] sm:$0xff]
        %v294 = vld [vmem:[%s242] sm:$0xff]
        %v295 = vld [vmem:[%s242 + $0x8] sm:$0xff]
        %v296 = vld [vmem:[%s242 + $0x10] sm:$0xff]
        %v297 = vld [vmem:[%s242 + $0x18] sm:$0xff]
        %v298 = vld [vmem:[%s251] sm:$0xff]
        %v299 = vsub.f32 %v290, %v294
        %v300 = vsub.f32 %v291, %v295
        %v301 = vsub.f32 %v292, %v296
        %v302 = vsub.f32 %v293, %v297
        %v303 = vand.u32 2147483647, %v299
        %v304 = vand.u32 2147483647, %v300
        %v305 = vand.u32 2147483647, %v301
        %v306 = vand.u32 2147483647, %v302
        %v307 = vadd.f32 %v303, %v304
        %v308 = vadd.f32 %v307, %v305
        %v309 = vadd.f32 %v308, %v306
        %v310 = vmul.f32 %v309, %v298
        %v311 = vlog2.pop %v298
        %v312 = vmul.f32 %v311, 0.6931472
        %v313 = vmul.f32 %v312, 0.2
        %v314 = vsub.f32 %v310, %v313
        %v315 = vadd.f32 %v289, %v314
        %316 = vst [vmem:[%s283] sm:$0xff] %v315
        %s317 = sand.u32 %s127, 1
        %s318 = scalar_lea.sflag [#allocation4], %s317
        %s319 = sand.u32 %s127, 1
        %s320 = smul.addr %s319, 8
        %s321 = scalar_lea.vmem [#allocation8], %s320
        // Predicated region
        $region49: #{tpu_custom_call.1} parent=31 // pred_check
          %p322 = pneg %p137
        $region50: #{tpu_custom_call.1} parent=31 // pred_check_branch
          %324 = sbr.rel (%p322) target = $region52
        $region51: #{tpu_custom_call.1} parent=31 // pred_region
          %s326 = ssub.s32 128, 128
          %327 = vsyncadd %s318, %s326
          %s328 = smul.addr %s27, 128
          %s329 = scalar_lea.hbm %s3, %s328
          %s331 = sshll.u32 %s321, 4
          %s332 = int_to_ptr.vmem [resolvable:$true] %s331
          %334 = dma.vmem_to_hbm [thread:$0]  %s332, 128, %s329, %s318
        $region52: #{tpu_custom_call.1} parent=31 // pred_fallthru
          _
      $region32: #{tpu_custom_call.1} parent=5 // pred_fallthru
        _
      %p335 = scmp.le.s32.totalorder 2, %s18
      // Predicated region
      $region53: #{tpu_custom_call.1} parent=5 // pred_check
        %p336 = pneg %p335
      $region54: #{tpu_custom_call.1} parent=5 // pred_check_branch
        %338 = sbr.rel (%p336) target = $region56
      $region55: #{tpu_custom_call.1} parent=5 // pred_region
        %s339 = ssub.s32 %s18, 2
        // Predicated region
        $region57: #{tpu_custom_call.1} parent=55 // pred_check
          %p340 = pneg %p143
        $region58: #{tpu_custom_call.1} parent=55 // pred_check_branch
          %342 = sbr.rel (%p340) target = $region60
        $region59: #{tpu_custom_call.1} parent=55 // pred_region
          %s343 = sand.u32 %s128, 1
          %s344 = scalar_lea.sflag [#allocation4], %s343
          %s345 = sand.u32 %s128, 1
          %s346 = smul.addr %s345, 8
          %s347 = scalar_lea.vmem [#allocation8], %s346
          %348 = dma.done %s344, 128
        $region60: #{tpu_custom_call.1} parent=55 // pred_fallthru
          _
      $region56: #{tpu_custom_call.1} parent=5 // pred_fallthru
        _
    $region6: #{tpu_custom_call.1} parent=1 // loop_footer
      %s22 = sadd.s32 1, %s18
    $region7: #{tpu_custom_call.1} parent=1 // loop_footer_branch
      %17 = sbr.rel target = $region3
    $region8: #{tpu_custom_call.1} parent=1 // loop_exit
      _
    %349 = vsyncpa [#allocation3], 1
    %s350 = scalar_lea.sflag [#allocation3], 1
    %351 = vsyncpa %s350, 1
    %352 = vsyncpa [#allocation6], 1
    %s353 = scalar_lea.sflag [#allocation6], 1
    %354 = vsyncpa %s353, 1
    %355 = vsyncpa [#allocation4], 1
    %s356 = scalar_lea.sflag [#allocation4], 1
    %357 = vsyncpa %s356, 1

</llo_original>
